<compile_context>
chip_gen: v6e
topology: v6e:2x2x1
jax: 0.10.0
libtpu: 0.0.40
codegen_flags: <defaults>
</compile_context>

<pallas_src>
import functools

import jax
import jax.numpy as jnp
from jax import lax
from jax.experimental import pallas as pl
from jax.experimental.pallas import tpu as pltpu


def _round_up(n, m):
    return ((n + m - 1) // m) * m


def _vmem_capacity_bytes():
    """Physical VMEM of this TPU generation; conservative fallback (v7x)."""
    try:
        return int(pltpu.get_tpu_info().vmem_capacity_bytes)
    except Exception:        # noqa: BLE001 - best-effort hardware query
        return 64 << 20


def _probe_copy_kernel(x_ref, o_ref):
    o_ref[...] = x_ref[...]


@functools.lru_cache(maxsize=None)
def _single_buffering_supported():
    """Feature-probe BlockSpec(pipeline_mode=pl.Buffered(1)) on this backend."""
    try:
        spec = pl.BlockSpec((8, 128), lambda i: (0, 0),
                            pipeline_mode=pl.Buffered(1))
        out = pl.pallas_call(
            _probe_copy_kernel,
            out_shape=jax.ShapeDtypeStruct((8, 128), jnp.float32),
            grid=(2,),
            in_specs=[spec],
            out_specs=pl.BlockSpec((8, 128), lambda i: (0, 0)),
        )(jnp.ones((8, 128), jnp.float32))
        jax.block_until_ready(out)
        return True
    except Exception:        # noqa: BLE001 - fall back to default buffering
        return False


def _spec(shape, index_map, buffers=None):
    """BlockSpec with an explicit buffer count when supported (else default)."""
    if buffers is not None and buffers != 2 and _single_buffering_supported():
        return pl.BlockSpec(shape, index_map, pipeline_mode=pl.Buffered(buffers))
    return pl.BlockSpec(shape, index_map)


# --------------------------------------------------------------------------
# Kernels
# --------------------------------------------------------------------------
def _srfu_resident_kernel(x_ref, w_ref, b_ref, o_ref):
    """All layers for one batch tile; the whole weight stack is VMEM-resident.

    x_ref: (TB, Hp)        input batch tile
    w_ref: (L, Hp, Hp)     full weight stack (weight_dtype, typically bf16)
    b_ref: (L, 1, Hp) f32  full bias stack
    o_ref: (TB, Hp)        output batch tile
    """
    n_layers = w_ref.shape[0]
    h = x_ref[...].astype(w_ref.dtype)

    def hidden_layer(l, h):
        y = jnp.dot(h, w_ref[l], preferred_element_type=jnp.float32)
        y = y + b_ref[l]                                  # (TB,Hp) + (1,Hp)
        return jnp.maximum(y, 0.0).astype(w_ref.dtype)

    h = lax.fori_loop(0, n_layers - 1, hidden_layer, h, unroll=True)

    y = jnp.dot(h, w_ref[n_layers - 1], preferred_element_type=jnp.float32)
    y = y + b_ref[n_layers - 1]                           # last layer: no ReLU
    o_ref[...] = y.astype(o_ref.dtype)


def _srfu_streamed_kernel(x_ref, w_ref, b_ref, o_ref, h_ref):
    """One grid step = one layer applied to one batch tile.

    Grid = (batch_tiles [parallel], layers [arbitrary, innermost]).

    x_ref: (TB, Hp)        input tile (read only on layer 0)
    w_ref: (1, Hp, Hp)     this layer's weights (streamed)
    b_ref: (1, 1, Hp) f32  this layer's bias
    o_ref: (TB, Hp)        output tile (written only on the last layer)
    h_ref: (TB, Hp)        persistent weight-dtype activation carry
    """
    layer = pl.program_id(1)
    last = pl.num_programs(1) - 1

    @pl.when(layer == 0)
    def _init():
        h_ref[...] = x_ref[...].astype(h_ref.dtype)

    y = jnp.dot(h_ref[...], w_ref[0], preferred_element_type=jnp.float32)
    y = y + b_ref[0]

    @pl.when(layer != last)
    def _hidden():
        h_ref[...] = jnp.maximum(y, 0.0).astype(h_ref.dtype)

    @pl.when(layer == last)
    def _final():
        o_ref[...] = y.astype(o_ref.dtype)


# --------------------------------------------------------------------------
# VMEM accounting
# --------------------------------------------------------------------------
def _resident_vmem_bytes(L, Hp, TB, w_size, x_size, w_buffers):
    weights = w_buffers * L * Hp * Hp * w_size
    biases = w_buffers * L * 8 * Hp * 4          # sublane-padded f32 biases
    io = 4 * TB * Hp * x_size                    # x + o, double-buffered each
    act = 3 * TB * Hp * 4                        # loop-carried activation temps
    return weights + biases + io + act


def _streamed_vmem_bytes(Hp, TB, w_size, x_size, x_buffers, w_buffers):
    weights = w_buffers * Hp * Hp * w_size       # one layer block, pipelined
    biases = w_buffers * 8 * Hp * 4
    io = (x_buffers + 2) * TB * Hp * x_size      # x (maybe single) + o (double)
    carry = TB * Hp * w_size
    act = 2 * TB * Hp * 4
    return weights + biases + io + carry + act


# --------------------------------------------------------------------------
# Wrapper
# --------------------------------------------------------------------------
def srfu_forward(x, weights, biases, *, block_b=512, weight_dtype=jnp.bfloat16,
                 weight_buffers=2, force_streamed=False):
    """SRFU forward: h = ReLU(h @ W_l + b_l) for hidden layers, no ReLU on last.

    x: (B, H); weights: (L, H, H); biases: (L, H).
    weight_buffers: streamed-path weight pipeline depth (set 3 on v6e if the
      weight DMA is still exposed after raising block_b).
    """
    B, H = x.shape
    L, H_in, H_out = weights.shape
    assert H_in == H and H_out == H and biases.shape == (L, H)

    Hp = _round_up(H, 128)                       # lane-dense feature axis
    w_size = jnp.dtype(weight_dtype).itemsize
    x_size = jnp.dtype(x.dtype).itemsize

    single_buf = _single_buffering_supported()
    res_w_buffers = 1 if single_buf else 2       # resident weights never change block
    str_x_buffers = 1 if single_buf else 2       # streamed x constant across layer axis
    str_w_buffers = weight_buffers if single_buf else max(2, weight_buffers)

    budget = int(0.80 * _vmem_capacity_bytes())  # generation-aware scoped-VMEM budget
    tb0 = max(8, min(_round_up(B, 8), _round_up(block_b, 8)))

    def fit_tb(fits):
        tb = tb0
        while True:
            if fits(tb):
                return tb
            if tb <= 8:
                return None
            tb = max(8, ((tb // 2) // 8) * 8)

    use_resident, TB = False, None
    if not force_streamed:
        TB = fit_tb(lambda tb: _resident_vmem_bytes(
            L, Hp, tb, w_size, x_size, res_w_buffers) <= budget)
        use_resident = TB is not None
    if not use_resident:
        TB = fit_tb(lambda tb: _streamed_vmem_bytes(
            Hp, tb, w_size, x_size, str_x_buffers, str_w_buffers) <= budget)
        if TB is None:
            # TODO(synk): add output-feature (N) tiling of the per-layer weight
            # block for Hp >= 4096 on v7x, where even one double-buffered
            # (Hp, Hp) bf16 layer overflows the 64 MiB VMEM.
            raise NotImplementedError(
                f"SRFU layer too large for VMEM on this TPU generation (Hp={Hp}); "
                "output-feature tiling of the weight block is not implemented.")

    Bp = _round_up(B, TB)

    # Zero-pad: padded weight rows/cols and biases are zero, so padded lanes
    # stay zero through every Linear+ReLU and the valid region is exact.
    x_p = jnp.zeros((Bp, Hp), x.dtype).at[:B, :H].set(x)
    w_p = jnp.zeros((L, Hp, Hp), weight_dtype).at[:, :H, :H].set(
        weights.astype(weight_dtype))
    b_p = jnp.zeros((L, 1, Hp), jnp.float32).at[:, 0, :H].set(
        biases.astype(jnp.float32))

    if use_resident:
        need = _resident_vmem_bytes(L, Hp, TB, w_size, x_size, res_w_buffers)
        grid = (Bp // TB,)
        in_specs = [
            pl.BlockSpec((TB, Hp), lambda b: (b, 0)),                        # x
            _spec((L, Hp, Hp), lambda b: (0, 0, 0), buffers=res_w_buffers),  # weights
            _spec((L, 1, Hp), lambda b: (0, 0, 0), buffers=res_w_buffers),   # biases
        ]
        out_specs = pl.BlockSpec((TB, Hp), lambda b: (b, 0))
        scratch_shapes = []
        kernel = _srfu_resident_kernel
        dim_sem = ("parallel",)                  # batch tiles shard across TCs (v7x)
    else:
        need = _streamed_vmem_bytes(Hp, TB, w_size, x_size,
                                    str_x_buffers, str_w_buffers)
        grid = (Bp // TB, L)
        in_specs = [
            _spec((TB, Hp), lambda b, l: (b, 0), buffers=str_x_buffers),     # x
            _spec((1, Hp, Hp), lambda b, l: (l, 0, 0), buffers=weight_buffers),
            pl.BlockSpec((1, 1, Hp), lambda b, l: (l, 0, 0)),                # biases
        ]
        # Output stays double-buffered: it is written once per batch tile and
        # its writeback then overlaps the next tile's first layers.
        out_specs = pl.BlockSpec((TB, Hp), lambda b, l: (b, 0))
        scratch_shapes = [pltpu.VMEM((TB, Hp), weight_dtype)]
        kernel = _srfu_streamed_kernel
        dim_sem = ("parallel", "arbitrary")

    vmem_limit = min(budget, max(int(1.2 * need) + (2 << 20), 32 << 20))

    out = pl.pallas_call(
        kernel,
        out_shape=jax.ShapeDtypeStruct((Bp, Hp), x.dtype),
        grid=grid,
        in_specs=in_specs,
        out_specs=out_specs,
        scratch_shapes=scratch_shapes,
        compiler_params=pltpu.CompilerParams(
            dimension_semantics=dim_sem,
            vmem_limit_bytes=vmem_limit,
        ),
    )(x_p, w_p, b_p)
    return out[:B, :H]


def srfu_reference(x, weights, biases, *, weight_dtype=jnp.bfloat16):
    """Pure-JAX reference mirroring SRFU.forward with the same weight/act cast."""
    w = weights.astype(weight_dtype).astype(jnp.float32)
    h = x.astype(jnp.float32)
    L = weights.shape[0]
    for l in range(L):
        h_in = h.astype(weight_dtype).astype(jnp.float32)
        h = jnp.dot(h_in, w[l], precision=jax.lax.Precision.HIGHEST)
        h = h + biases[l].astype(jnp.float32)[None, :]
        if l < L - 1:
            h = jnp.maximum(h, 0.0)
    return h.astype(x.dtype)


if __name__ == "__main__":
    key = jax.random.PRNGKey(0)
    STD = 0.1   # SRFU.init_params(std=0.1)

    def make_case(k, B, H, L):
        kx, kw = jax.random.split(k)
        x = jax.random.normal(kx, (B, H), dtype=jnp.float32)
        w = STD * jax.random.normal(kw, (L, H, H), dtype=jnp.float32)
        b = jnp.zeros((L, H), dtype=jnp.float32)
        return x, w, b

    cases = [
        # Demo size -> resident-weights path, single batch tile.
        dict(B=8, H=32, L=3, block_b=128, force_streamed=False),
        # Resident path with multiple batch tiles and lane padding (96 -> 128).
        dict(B=24, H=96, L=4, block_b=8, force_streamed=False),
        # Force the streamed (layer-pipelined) fallback path.
        dict(B=16, H=64, L=3, block_b=8, force_streamed=True),
    ]

    for i, c in enumerate(cases):
        key, sub = jax.random.split(key)
        x, w, b = make_case(sub, c["B"], c["H"], c["L"])
        out = srfu_forward(x, w, b, block_b=c["block_b"],
                           force_streamed=c["force_streamed"])
        out = jax.block_until_ready(out)
        ref = srfu_reference(x, w, b)
        assert out.shape == (c["B"], c["H"])
        err = float(jnp.max(jnp.abs(out - ref)))
        assert jnp.allclose(out, ref, atol=1e-4, rtol=1e-4), (i, err)

    print("KERNEL_OK")
</pallas_src>

<mosaic_0001>
module attributes {stable_mosaic.version = 11 : i64} {
  func.func @_probe_copy_kernel(%arg0: i32, %arg1: memref<8x128xf32, #tpu.memory_space<vmem>>, %arg2: memref<8x128xf32, #tpu.memory_space<vmem>>) attributes {dimension_semantics = [#tpu.dimension_semantics<arbitrary>], iteration_bounds = array<i64: 2>, scalar_prefetch = 0 : i64, scratch_operands = 0 : i64, tpu.core_type = #tpu.core_type<tc>, window_params = [{pipeline_mode = #tpu.pipeline_mode<synchronous>, transform_indices = @transform_0, window_bounds = array<i64: 8, 128>}, {pipeline_mode = #tpu.pipeline_mode<synchronous>, transform_indices = @transform_1, window_bounds = array<i64: 8, 128>}]} {
    %c0 = arith.constant 0 : index
    %c0_0 = arith.constant 0 : index
    %0 = vector.load %arg1[%c0, %c0_0] : memref<8x128xf32, #tpu.memory_space<vmem>>, vector<8x128xf32>
    %c0_1 = arith.constant 0 : index
    %c0_2 = arith.constant 0 : index
    %1 = vector.load %arg2[%c0_1, %c0_2] : memref<8x128xf32, #tpu.memory_space<vmem>>, vector<8x128xf32>
    tpu.vector_store %arg2[%c0_1, %c0_2], %0 {strides = array<i32>} : memref<8x128xf32, #tpu.memory_space<vmem>>, vector<8x128xf32>,
    return
  }
  func.func @transform_0(%arg0: i32) -> (i32, i32) {
    %c0_i32 = arith.constant 0 : i32
    %c0_i32_0 = arith.constant 0 : i32
    %c0_i32_1 = arith.constant 0 : i32
    return %c0_i32, %c0_i32_0 : i32, i32
  }
  func.func @transform_1(%arg0: i32) -> (i32, i32) {
    %c0_i32 = arith.constant 0 : i32
    %c0_i32_0 = arith.constant 0 : i32
    %c0_i32_1 = arith.constant 0 : i32
    return %c0_i32, %c0_i32_0 : i32, i32
  }
}

module attributes {stable_mosaic.version = 11 : i64} {
  func.func @_srfu_resident_kernel(%arg0: i32, %arg1: memref<8x128xf32, #tpu.memory_space<vmem>>, %arg2: memref<3x128x128xbf16, #tpu.memory_space<vmem>>, %arg3: memref<3x1x128xf32, #tpu.memory_space<vmem>>, %arg4: memref<8x128xf32, #tpu.memory_space<vmem>>) attributes {dimension_semantics = [#tpu.dimension_semantics<parallel>], iteration_bounds = array<i64: 1>, scalar_prefetch = 0 : i64, scratch_operands = 0 : i64, tpu.core_type = #tpu.core_type<tc>, window_params = [{transform_indices = @transform_0, window_bounds = array<i64: 8, 128>}, {pipeline_mode = #tpu.pipeline_mode<synchronous>, transform_indices = @transform_1, window_bounds = array<i64: 3, 128, 128>}, {pipeline_mode = #tpu.pipeline_mode<synchronous>, transform_indices = @transform_2, window_bounds = array<i64: 3, 1, 128>}, {transform_indices = @transform_3, window_bounds = array<i64: 8, 128>}]} {
    %c0 = arith.constant 0 : index
    %c0_0 = arith.constant 0 : index
    %0 = vector.load %arg1[%c0, %c0_0] : memref<8x128xf32, #tpu.memory_space<vmem>>, vector<8x128xf32>
    %1 = arith.truncf %0 : vector<8x128xf32> to vector<8x128xbf16>
    %c0_i32 = arith.constant 0 : i32
    %2 = arith.index_cast %c0_i32 : i32 to index
    %c0_1 = arith.constant 0 : index
    %c0_2 = arith.constant 0 : index
    %3 = vector.load %arg2[%2, %c0_1, %c0_2] : memref<3x128x128xbf16, #tpu.memory_space<vmem>>, vector<1x128x128xbf16>
    %4 = vector.shape_cast %3 : vector<1x128x128xbf16> to vector<128x128xbf16>
    %cst = arith.constant dense<0.000000e+00> : vector<8x128xf32>
    %5 = tpu.matmul %1, %4, %cst {dimension_numbers = #tpu.dot_dimension_numbers<[1], [0], [0], [1], [0, 0, 1, 1], [], []>} : vector<8x128xbf16>, vector<128x128xbf16>, vector<8x128xf32> -> vector<8x128xf32>
    %6 = arith.index_cast %c0_i32 : i32 to index
    %c0_3 = arith.constant 0 : index
    %c0_4 = arith.constant 0 : index
    %7 = vector.load %arg3[%6, %c0_3, %c0_4] : memref<3x1x128xf32, #tpu.memory_space<vmem>>, vector<1x1x128xf32>
    %8 = vector.shape_cast %7 : vector<1x1x128xf32> to vector<1x128xf32>
    %9 = vector.broadcast %8 : vector<1x128xf32> to vector<8x128xf32>
    %10 = arith.addf %5, %9 : vector<8x128xf32>
    %cst_5 = arith.constant 0.000000e+00 : f32
    %11 = vector.broadcast %cst_5 : f32 to vector<8x128xf32>
    %12 = arith.maximumf %10, %11 : vector<8x128xf32>
    %13 = arith.truncf %12 : vector<8x128xf32> to vector<8x128xbf16>
    %c1_i32 = arith.constant 1 : i32
    %14 = arith.index_cast %c1_i32 : i32 to index
    %c0_6 = arith.constant 0 : index
    %c0_7 = arith.constant 0 : index
    %15 = vector.load %arg2[%14, %c0_6, %c0_7] : memref<3x128x128xbf16, #tpu.memory_space<vmem>>, vector<1x128x128xbf16>
    %16 = vector.shape_cast %15 : vector<1x128x128xbf16> to vector<128x128xbf16>
    %cst_8 = arith.constant dense<0.000000e+00> : vector<8x128xf32>
    %17 = tpu.matmul %13, %16, %cst_8 {dimension_numbers = #tpu.dot_dimension_numbers<[1], [0], [0], [1], [0, 0, 1, 1], [], []>} : vector<8x128xbf16>, vector<128x128xbf16>, vector<8x128xf32> -> vector<8x128xf32>
    %18 = arith.index_cast %c1_i32 : i32 to index
    %c0_9 = arith.constant 0 : index
    %c0_10 = arith.constant 0 : index
    %19 = vector.load %arg3[%18, %c0_9, %c0_10] : memref<3x1x128xf32, #tpu.memory_space<vmem>>, vector<1x1x128xf32>
    %20 = vector.shape_cast %19 : vector<1x1x128xf32> to vector<1x128xf32>
    %21 = vector.broadcast %20 : vector<1x128xf32> to vector<8x128xf32>
    %22 = arith.addf %17, %21 : vector<8x128xf32>
    %cst_11 = arith.constant 0.000000e+00 : f32
    %23 = vector.broadcast %cst_11 : f32 to vector<8x128xf32>
    %24 = arith.maximumf %22, %23 : vector<8x128xf32>
    %25 = arith.truncf %24 : vector<8x128xf32> to vector<8x128xbf16>
    %c2_i32 = arith.constant 2 : i32
    %c2 = arith.constant 2 : index
    %c0_12 = arith.constant 0 : index
    %c0_13 = arith.constant 0 : index
    %26 = vector.load %arg2[%c2, %c0_12, %c0_13] : memref<3x128x128xbf16, #tpu.memory_space<vmem>>, vector<1x128x128xbf16>
    %27 = vector.shape_cast %26 : vector<1x128x128xbf16> to vector<128x128xbf16>
    %cst_14 = arith.constant dense<0.000000e+00> : vector<8x128xf32>
    %28 = tpu.matmul %25, %27, %cst_14 {dimension_numbers = #tpu.dot_dimension_numbers<[1], [0], [0], [1], [0, 0, 1, 1], [], []>} : vector<8x128xbf16>, vector<128x128xbf16>, vector<8x128xf32> -> vector<8x128xf32>
    %c2_15 = arith.constant 2 : index
    %c0_16 = arith.constant 0 : index
    %c0_17 = arith.constant 0 : index
    %29 = vector.load %arg3[%c2_15, %c0_16, %c0_17] : memref<3x1x128xf32, #tpu.memory_space<vmem>>, vector<1x1x128xf32>
    %30 = vector.shape_cast %29 : vector<1x1x128xf32> to vector<1x128xf32>
    %31 = vector.broadcast %30 : vector<1x128xf32> to vector<8x128xf32>
    %32 = arith.addf %28, %31 : vector<8x128xf32>
    %c0_18 = arith.constant 0 : index
    %c0_19 = arith.constant 0 : index
    %33 = vector.load %arg4[%c0_18, %c0_19] : memref<8x128xf32, #tpu.memory_space<vmem>>, vector<8x128xf32>
    tpu.vector_store %arg4[%c0_18, %c0_19], %32 {strides = array<i32>} : memref<8x128xf32, #tpu.memory_space<vmem>>, vector<8x128xf32>,
    return
  }
  func.func @transform_0(%arg0: i32) -> (i32, i32) {
    %c0_i32 = arith.constant 0 : i32
    %c0_i32_0 = arith.constant 0 : i32
    return %arg0, %c0_i32 : i32, i32
  }
  func.func @transform_1(%arg0: i32) -> (i32, i32, i32) {
    %c0_i32 = arith.constant 0 : i32
    %c0_i32_0 = arith.constant 0 : i32
    %c0_i32_1 = arith.constant 0 : i32
    %c0_i32_2 = arith.constant 0 : i32
    return %c0_i32, %c0_i32_0, %c0_i32_1 : i32, i32, i32
  }
  func.func @transform_2(%arg0: i32) -> (i32, i32, i32) {
    %c0_i32 = arith.constant 0 : i32
    %c0_i32_0 = arith.constant 0 : i32
    %c0_i32_1 = arith.constant 0 : i32
    %c0_i32_2 = arith.constant 0 : i32
    return %c0_i32, %c0_i32_0, %c0_i32_1 : i32, i32, i32
  }
  func.func @transform_3(%arg0: i32) -> (i32, i32) {
    %c0_i32 = arith.constant 0 : i32
    %c0_i32_0 = arith.constant 0 : i32
    return %arg0, %c0_i32 : i32, i32
  }
}

</mosaic_0001>

<llo_original>
// kernel: tpu_custom_call.1
$region0: #{tpu_custom_call.1}
  #allocation0 [shape = 'u32[]', space=smem, size = 0x4, offset = 0x4, fixed_abs, tag = 'smem constant byte address 0x4 - core index']
  #allocation1 [shape = 'u32[144,128]{1,0:T(1,128)}', space=vmem, size = 0x12000, scoped, tag = 'internal scratch']
  %s0 = inlined_call_operand.hbm [shape: f32[8,128], index: 0, kind: input, shape index: {}]
  %s1 = inlined_call_operand.hbm [shape: f32[8,128], index: 1, kind: output, shape index: {}]
  %s2 = sld [smem:[#allocation0]]
  $region41: #{tpu_custom_call.1} parent=0
    _
  %s4 = ssub.s32 1, %s2
  %s5 = scalar_select 0, %s4, %s2
  $region1: #{tpu_custom_call.1} parent=0
    #allocation2 [shape = 'u8[4096]{0}', space=vmem, size = 0x1000, scoped, tag = 'input window, operand 0, single buffered']
    #allocation3 [shape = 's32[2]{0}', space=sflag, size = 0x8, scoped, tag = 'scoped memory for tpu_custom_call.1']
    #allocation4 [shape = 's32[2]{0}', space=sflag, size = 0x8, scoped, tag = 'scoped memory for tpu_custom_call.1']
    #allocation5 [shape = 'u8[4096]{0}', space=vmem, size = 0x1000, scoped, tag = 'output window, operand 0, single buffered']
    %6 = vsyncpa [#allocation3], 0
    %7 = vsyncpa [#allocation4], 0
    loop: start=0, step=1, limit=4
    $region2: #{tpu_custom_call.1} parent=1 // loop_pre_header
      _
    $region3: #{tpu_custom_call.1} parent=1 // loop_header
      %s9 = sphi 0, %s13
      %p10 = scmp.ge.s32.totalorder %s9, 4
      %s17 = sphi 0, %s17
      %s19 = sphi 0, %s17
      %s20 = sphi 0, %s19
      %s34 = sphi 0, %s20
      %s38 = sphi 0, %s38
      %s40 = sphi 0, %s38
      %s41 = sphi 0, %s40
      %s55 = sphi 0, %s41
    $region4: #{tpu_custom_call.1} parent=1 // loop_header_branch
      %12 = sbr.rel (%p10) target = $region8
    $region5: #{tpu_custom_call.1} parent=1 // loop_body
      %s14 = ssub.s32 %s9, 1
      %s15 = ssub.s32 %s9, 2
      %s16 = sadd.s32 %s9, 1
      %s18 = sadd.s32 %s17, 1
      %p21 = scmp.eq.s32.totalorder %s9, 1
      %p22 = scmp.ne.s32.totalorder %s17, %s19
      %p23 = scmp.eq.s32.totalorder %s9, 0
      %p24 = por %p22, %p23
      %p25 = scmp.ne.s32.totalorder %s17, %s19
      %p26 = scmp.eq.s32.totalorder %s14, 1
      %p27 = por %p25, %p26
      %p28 = scmp.ne.s32.totalorder %s19, %s20
      %p29 = scmp.eq.s32.totalorder %s14, 0
      %p30 = por %p28, %p29
      %p31 = scmp.ne.s32.totalorder %s19, %s20
      %p32 = scmp.eq.s32.totalorder %s15, 1
      %p33 = por %p31, %p32
      %p35 = scmp.ne.s32.totalorder %s20, %s34
      %p36 = scmp.eq.s32.totalorder %s15, 0
      %p37 = por %p35, %p36
      %s39 = sadd.s32 %s38, 1
      %p42 = scmp.eq.s32.totalorder %s9, 1
      %p43 = scmp.ne.s32.totalorder %s38, %s40
      %p44 = scmp.eq.s32.totalorder %s9, 0
      %p45 = por %p43, %p44
      %p46 = scmp.ne.s32.totalorder %s38, %s40
      %p47 = scmp.eq.s32.totalorder %s14, 1
      %p48 = por %p46, %p47
      %p49 = scmp.ne.s32.totalorder %s40, %s41
      %p50 = scmp.eq.s32.totalorder %s14, 0
      %p51 = por %p49, %p50
      %p52 = scmp.ne.s32.totalorder %s40, %s41
      %p53 = scmp.eq.s32.totalorder %s15, 1
      %p54 = por %p52, %p53
      %p56 = scmp.ne.s32.totalorder %s41, %s55
      %p57 = scmp.eq.s32.totalorder %s15, 0
      %p58 = por %p56, %p57
      %p59 = scmp.le.s32.totalorder 1, %s9
      %p60 = scmp.lt.s32.totalorder %s9, 3
      %p61 = pnand %p59, %p60
      %p62 = pneg %p61
      // Predicated region
      $region9: #{tpu_custom_call.1} parent=5 // pred_check
        _
      $region10: #{tpu_custom_call.1} parent=5 // pred_check_branch
        %64 = sbr.rel (%p61) target = $region12
      $region11: #{tpu_custom_call.1} parent=5 // pred_region
        %s65 = ssub.s32 %s9, 1
        // Predicated region
        $region13: #{tpu_custom_call.1} parent=11 // pred_check
          %p66 = pneg %p30
        $region14: #{tpu_custom_call.1} parent=11 // pred_check_branch
          %68 = sbr.rel (%p66) target = $region16
        $region15: #{tpu_custom_call.1} parent=11 // pred_region
          %s70 = ssub.s32 128, 128
          %71 = vsyncadd [#allocation3], %s70
          %s73 = sshll.u32 [#allocation2], 4
          %s74 = int_to_ptr.vmem [resolvable:$true] %s73
          %76 = dma.hbm_to_vmem [thread:$0]  %s0, 128, %s74, [#allocation3]
        $region16: #{tpu_custom_call.1} parent=11 // pred_fallthru
          _
      $region12: #{tpu_custom_call.1} parent=5 // pred_fallthru
        _
      %p77 = scmp.lt.s32.totalorder %s9, 2
      // Predicated region
      $region17: #{tpu_custom_call.1} parent=5 // pred_check
        %p78 = pneg %p77
      $region18: #{tpu_custom_call.1} parent=5 // pred_check_branch
        %80 = sbr.rel (%p78) target = $region20
      $region19: #{tpu_custom_call.1} parent=5 // pred_region
        _
      $region20: #{tpu_custom_call.1} parent=5 // pred_fallthru
        _
      %p81 = scmp.le.s32.totalorder 1, %s9
      %p82 = scmp.lt.s32.totalorder %s9, 3
      %p83 = pnand %p81, %p82
      %p84 = pneg %p83
      // Predicated region
      $region21: #{tpu_custom_call.1} parent=5 // pred_check
        _
      $region22: #{tpu_custom_call.1} parent=5 // pred_check_branch
        %86 = sbr.rel (%p83) target = $region24
      $region23: #{tpu_custom_call.1} parent=5 // pred_region
        %s87 = ssub.s32 %s9, 1
        // Predicated region
        $region25: #{tpu_custom_call.1} parent=23 // pred_check
          %p88 = pneg %p30
        $region26: #{tpu_custom_call.1} parent=23 // pred_check_branch
          %90 = sbr.rel (%p88) target = $region28
        $region27: #{tpu_custom_call.1} parent=23 // pred_region
          %91 = dma.done [#allocation3], 128
        $region28: #{tpu_custom_call.1} parent=23 // pred_fallthru
          _
        %p92 = pneg %p30
        %p93 = pneg %p27
        %p94 = pneg %p51
        %p95 = pneg %p48
        %v96 = vld [vmem:[#allocation2] sm:$0xff]
        %97 = vst [vmem:[#allocation5] sm:$0xff] %v96
        // Predicated region
        $region29: #{tpu_custom_call.1} parent=23 // pred_check
          %p98 = pneg %p48
        $region30: #{tpu_custom_call.1} parent=23 // pred_check_branch
          %100 = sbr.rel (%p98) target = $region32
        $region31: #{tpu_custom_call.1} parent=23 // pred_region
          %s102 = ssub.s32 128, 128
          %103 = vsyncadd [#allocation4], %s102
          %s105 = sshll.u32 [#allocation5], 4
          %s106 = int_to_ptr.vmem [resolvable:$true] %s105
          %108 = dma.vmem_to_hbm [thread:$0]  %s106, 128, %s1, [#allocation4]
        $region32: #{tpu_custom_call.1} parent=23 // pred_fallthru
          _
        // Predicated region
        $region33: #{tpu_custom_call.1} parent=23 // pred_check
          %p109 = pneg %p48
        $region34: #{tpu_custom_call.1} parent=23 // pred_check_branch
          %111 = sbr.rel (%p109) target = $region36
        $region35: #{tpu_custom_call.1} parent=23 // pred_region
          %112 = dma.done [#allocation4], 128
        $region36: #{tpu_custom_call.1} parent=23 // pred_fallthru
          _
      $region24: #{tpu_custom_call.1} parent=5 // pred_fallthru
        _
      %p113 = scmp.le.s32.totalorder 2, %s9
      // Predicated region
      $region37: #{tpu_custom_call.1} parent=5 // pred_check
        %p114 = pneg %p113
      $region38: #{tpu_custom_call.1} parent=5 // pred_check_branch
        %116 = sbr.rel (%p114) target = $region40
      $region39: #{tpu_custom_call.1} parent=5 // pred_region
        %s117 = ssub.s32 %s9, 2
      $region40: #{tpu_custom_call.1} parent=5 // pred_fallthru
        _
    $region6: #{tpu_custom_call.1} parent=1 // loop_footer
      %s13 = sadd.s32 1, %s9
    $region7: #{tpu_custom_call.1} parent=1 // loop_footer_branch
      %8 = sbr.rel target = $region3
    $region8: #{tpu_custom_call.1} parent=1 // loop_exit
      _
    %118 = vsyncpa [#allocation3], 1
    %s119 = scalar_lea.sflag [#allocation3], 1
    %120 = vsyncpa %s119, 1
    %121 = vsyncpa [#allocation4], 1
    %s122 = scalar_lea.sflag [#allocation4], 1
    %123 = vsyncpa %s122, 1

// kernel: tpu_custom_call.1
$region0: #{tpu_custom_call.1}
  #allocation0 [shape = 'u32[]', space=smem, size = 0x4, offset = 0x4, fixed_abs, tag = 'smem constant byte address 0x4 - core index']
  #allocation1 [shape = 'u32[144,128]{1,0:T(1,128)}', space=vmem, size = 0x12000, scoped, tag = 'internal scratch']
  %s0 = inlined_call_operand.hbm [shape: f32[8,128], index: 0, kind: input, shape index: {}]
  %s1 = inlined_call_operand.hbm [shape: bf16[3,128,128], index: 1, kind: input, shape index: {}]
  %s2 = inlined_call_operand.vmem [shape: f32[3,1,128], index: 2, kind: input, shape index: {}]
  %s3 = inlined_call_operand.hbm [shape: f32[8,128], index: 3, kind: output, shape index: {}]
  %s4 = sld [smem:[#allocation0]]
  $region30: #{tpu_custom_call.1} parent=0
    _
  %s6 = ssub.s32 1, %s4
  %s7 = scalar_select 0, %s6, %s4
  $region1: #{tpu_custom_call.1} parent=0
    #allocation2 [shape = 'u8[4096]{0}', space=vmem, size = 0x1000, scoped, tag = 'input window, operand 0, single buffered']
    #allocation3 [shape = 's32[1]{0}', space=sflag, size = 0x4, scoped, tag = 'scoped memory for tpu_custom_call.1']
    #allocation4 [shape = 's32[1]{0}', space=sflag, size = 0x4, scoped, tag = 'scoped memory for tpu_custom_call.1']
    #allocation5 [shape = 'u8[98304]{0}', space=vmem, size = 0x18000, scoped, tag = 'input window, operand 1, single buffered']
    #allocation6 [shape = 's32[1]{0}', space=sflag, size = 0x4, scoped, tag = 'scoped memory for tpu_custom_call.1']
    #allocation7 [shape = 'u8[4096]{0}', space=vmem, size = 0x1000, scoped, tag = 'output window, operand 0, single buffered']
    %8 = vsyncpa [#allocation3], 0
    %9 = vsyncpa [#allocation6], 0
    %10 = vsyncpa [#allocation4], 0
    // Predicated region
    $region2: #{tpu_custom_call.1} parent=1 // pred_check
      _
    $region3: #{tpu_custom_call.1} parent=1 // pred_check_branch
      %12 = sbr.rel (0) target = $region5
    $region4: #{tpu_custom_call.1} parent=1 // pred_region
      %s14 = ssub.s32 128, 128
      %15 = vsyncadd [#allocation3], %s14
      %s17 = sshll.u32 [#allocation2], 4
      %s18 = int_to_ptr.vmem [resolvable:$true] %s17
      %20 = dma.hbm_to_vmem [thread:$0]  %s0, 128, %s18, [#allocation3]
    $region5: #{tpu_custom_call.1} parent=1 // pred_fallthru
      _
    // Predicated region
    $region6: #{tpu_custom_call.1} parent=1 // pred_check
      _
    $region7: #{tpu_custom_call.1} parent=1 // pred_check_branch
      %22 = sbr.rel (0) target = $region9
    $region8: #{tpu_custom_call.1} parent=1 // pred_region
      %s24 = ssub.s32 3072, 3072
      %25 = vsyncadd [#allocation6], %s24
      %s26 = sshll.u32 [#allocation5], 4
      %s27 = int_to_ptr.vmem [resolvable:$true] %s26
      %32 = dma.hbm_to_vmem [thread:$0]  %s1, 3072, %s27, [#allocation6], 64, 64, 4
    $region9: #{tpu_custom_call.1} parent=1 // pred_fallthru
      _
    // Predicated region
    $region10: #{tpu_custom_call.1} parent=1 // pred_check
      _
    $region11: #{tpu_custom_call.1} parent=1 // pred_check_branch
      %34 = sbr.rel (0) target = $region13
    $region12: #{tpu_custom_call.1} parent=1 // pred_region
      _
    $region13: #{tpu_custom_call.1} parent=1 // pred_fallthru
      _
    // Predicated region
    $region14: #{tpu_custom_call.1} parent=1 // pred_check
      _
    $region15: #{tpu_custom_call.1} parent=1 // pred_check_branch
      %36 = sbr.rel (0) target = $region17
    $region16: #{tpu_custom_call.1} parent=1 // pred_region
      %37 = dma.done [#allocation3], 128
    $region17: #{tpu_custom_call.1} parent=1 // pred_fallthru
      _
    // Predicated region
    $region18: #{tpu_custom_call.1} parent=1 // pred_check
      _
    $region19: #{tpu_custom_call.1} parent=1 // pred_check_branch
      %39 = sbr.rel (0) target = $region21
    $region20: #{tpu_custom_call.1} parent=1 // pred_region
      %40 = dma.done [#allocation6], 3072
    $region21: #{tpu_custom_call.1} parent=1 // pred_fallthru
      _
    %v42 = vld [vmem:[#allocation2] sm:$0xff]
    %v43 = vpack.c.bf16 %v42, %v42
    %v44 = vld [vmem:[#allocation5] sm:$0xf]
    %v45 = vld [vmem:[#allocation5 + $0x4] sm:$0xf]
    %v46 = vld [vmem:[#allocation5 + $0x8] sm:$0xf]
    %v47 = vld [vmem:[#allocation5 + $0xc] sm:$0xf]
    %v48 = vld [vmem:[#allocation5 + $0x10] sm:$0xf]
    %v49 = vld [vmem:[#allocation5 + $0x14] sm:$0xf]
    %v50 = vld [vmem:[#allocation5 + $0x18] sm:$0xf]
    %v51 = vld [vmem:[#allocation5 + $0x1c] sm:$0xf]
    %v52 = vld [vmem:[#allocation5 + $0x20] sm:$0xf]
    %v53 = vld [vmem:[#allocation5 + $0x24] sm:$0xf]
    %v54 = vld [vmem:[#allocation5 + $0x28] sm:$0xf]
    %v55 = vld [vmem:[#allocation5 + $0x2c] sm:$0xf]
    %v56 = vld [vmem:[#allocation5 + $0x30] sm:$0xf]
    %v57 = vld [vmem:[#allocation5 + $0x34] sm:$0xf]
    %v58 = vld [vmem:[#allocation5 + $0x38] sm:$0xf]
    %v59 = vld [vmem:[#allocation5 + $0x3c] sm:$0xf]
    %v60 = vld [vmem:[%s2] sm:$0x1]
    %v62 = vlaneseq
    %v63 = vshrl.u32 %v62, 7
    %v64 = vsub.s32 0, %v63
    %v65 = vrot.slane %v60, %v64
    %v83 = vunpack.c.l.b16 %v44
    %v84 = vunpack.c.l.b16 %v45
    %v85 = vunpack.c.l.b16 %v46
    %v86 = vunpack.c.l.b16 %v47
    %v87 = vunpack.c.l.b16 %v48
    %v88 = vunpack.c.l.b16 %v49
    %v89 = vunpack.c.l.b16 %v50
    %v90 = vunpack.c.l.b16 %v51
    %v91 = vunpack.c.l.b16 %v52
    %v92 = vunpack.c.l.b16 %v53
    %v93 = vunpack.c.l.b16 %v54
    %v94 = vunpack.c.l.b16 %v55
    %v95 = vunpack.c.l.b16 %v56
    %v96 = vunpack.c.l.b16 %v57
    %v97 = vunpack.c.l.b16 %v58
    %v98 = vunpack.c.l.b16 %v59
    %v99 = vpack.c.b16 %v84, %v83
    %v100 = vpack.c.b16 %v86, %v85
    %v101 = vpack.c.b16 %v88, %v87
    %v102 = vpack.c.b16 %v90, %v89
    %v103 = vpack.c.b16 %v92, %v91
    %v104 = vpack.c.b16 %v94, %v93
    %v105 = vpack.c.b16 %v96, %v95
    %v106 = vpack.c.b16 %v98, %v97
    %115 = vmatprep.subr.bf16.mxu0 0
    %116 = vmatpush1.bf16.msra.mxu0 %v106
    %117 = vmatprep.subr.bf16.mxu0 0
    %118 = vmatpush1.bf16.msra.mxu0 %v105
    %119 = vmatprep.subr.bf16.mxu0 0
    %120 = vmatpush1.bf16.msra.mxu0 %v104
    %121 = vmatprep.subr.bf16.mxu0 0
    %122 = vmatpush1.bf16.msra.mxu0 %v103
    %123 = vmatprep.subr.bf16.mxu0 0
    %124 = vmatpush1.bf16.msra.mxu0 %v102
    %125 = vmatprep.subr.bf16.mxu0 0
    %126 = vmatpush1.bf16.msra.mxu0 %v101
    %127 = vmatprep.subr.bf16.mxu0 0
    %128 = vmatpush1.bf16.msra.mxu0 %v100
    %129 = vmatprep.subr.bf16.mxu0 0
    %130 = vmatpush1.bf16.msra.mxu0 %v99
    %131 = vmatprep.subr.bf16.mxu0 0
    %132 = vmatpush2.bf16.msra.mxu0 0
    %133 = vmatprep.subr.bf16.mxu0 0
    %134 = vmatpush2.bf16.msra.mxu0 0
    %135 = vmatprep.subr.bf16.mxu0 0
    %136 = vmatpush2.bf16.msra.mxu0 0
    %137 = vmatprep.subr.bf16.mxu0 0
    %138 = vmatpush2.bf16.msra.mxu0 0
    %139 = vmatprep.subr.bf16.mxu0 0
    %140 = vmatpush2.bf16.msra.mxu0 0
    %141 = vmatprep.subr.bf16.mxu0 0
    %142 = vmatpush2.bf16.msra.mxu0 0
    %143 = vmatprep.subr.bf16.mxu0 0
    %144 = vmatpush2.bf16.msra.mxu0 0
    %145 = vmatprep.subr.bf16.mxu0 0
    %146 = vmatpush2.bf16.msra.mxu0 0
    %147 = vmatprep.mubr.bf16.mxu0 0
    %148 = vmatmul.mubr.bf16.gmra.mxu0 %v43
    %v149 = vpop.f32.mrf.mxu0
    %v150 = vadd.f32 %v65, %v149
    %v151 = vpop.f32.mrf.mxu0
    %v152 = vpop.f32.mrf.mxu0
    %v153 = vpop.f32.mrf.mxu0
    %154 = vdwg.mxu0
    %v155 = vmax.f32 %v150, 0.0
    %v156 = vpack.c.bf16 %v155, %v155
    %s157 = scalar_lea.vmem [#allocation5], 64
    %v158 = vld [vmem:[%s157] sm:$0xf]
    %v159 = vld [vmem:[%s157 + $0x4] sm:$0xf]
    %v160 = vld [vmem:[%s157 + $0x8] sm:$0xf]
    %v161 = vld [vmem:[%s157 + $0xc] sm:$0xf]
    %v162 = vld [vmem:[%s157 + $0x10] sm:$0xf]
    %v163 = vld [vmem:[%s157 + $0x14] sm:$0xf]
    %v164 = vld [vmem:[%s157 + $0x18] sm:$0xf]
    %v165 = vld [vmem:[%s157 + $0x1c] sm:$0xf]
    %v166 = vld [vmem:[%s157 + $0x20] sm:$0xf]
    %v167 = vld [vmem:[%s157 + $0x24] sm:$0xf]
    %v168 = vld [vmem:[%s157 + $0x28] sm:$0xf]
    %v169 = vld [vmem:[%s157 + $0x2c] sm:$0xf]
    %v170 = vld [vmem:[%s157 + $0x30] sm:$0xf]
    %v171 = vld [vmem:[%s157 + $0x34] sm:$0xf]
    %v172 = vld [vmem:[%s157 + $0x38] sm:$0xf]
    %v173 = vld [vmem:[%s157 + $0x3c] sm:$0xf]
    %s174 = scalar_lea.vmem %s2, 1
    %v175 = vld [vmem:[%s174] sm:$0x1]
    %v177 = vlaneseq
    %v178 = vshrl.u32 %v177, 7
    %v179 = vsub.s32 0, %v178
    %v180 = vrot.slane %v175, %v179
    %v198 = vunpack.c.l.b16 %v158
    %v199 = vunpack.c.l.b16 %v159
    %v200 = vunpack.c.l.b16 %v160
    %v201 = vunpack.c.l.b16 %v161
    %v202 = vunpack.c.l.b16 %v162
    %v203 = vunpack.c.l.b16 %v163
    %v204 = vunpack.c.l.b16 %v164
    %v205 = vunpack.c.l.b16 %v165
    %v206 = vunpack.c.l.b16 %v166
    %v207 = vunpack.c.l.b16 %v167
    %v208 = vunpack.c.l.b16 %v168
    %v209 = vunpack.c.l.b16 %v169
    %v210 = vunpack.c.l.b16 %v170
    %v211 = vunpack.c.l.b16 %v171
    %v212 = vunpack.c.l.b16 %v172
    %v213 = vunpack.c.l.b16 %v173
    %v214 = vpack.c.b16 %v199, %v198
    %v215 = vpack.c.b16 %v201, %v200
    %v216 = vpack.c.b16 %v203, %v202
    %v217 = vpack.c.b16 %v205, %v204
    %v218 = vpack.c.b16 %v207, %v206
    %v219 = vpack.c.b16 %v209, %v208
    %v220 = vpack.c.b16 %v211, %v210
    %v221 = vpack.c.b16 %v213, %v212
    %230 = vmatprep.subr.bf16.mxu0 0
    %231 = vmatpush1.bf16.msra.mxu0 %v221
    %232 = vmatprep.subr.bf16.mxu0 0
    %233 = vmatpush1.bf16.msra.mxu0 %v220
    %234 = vmatprep.subr.bf16.mxu0 0
    %235 = vmatpush1.bf16.msra.mxu0 %v219
    %236 = vmatprep.subr.bf16.mxu0 0
    %237 = vmatpush1.bf16.msra.mxu0 %v218
    %238 = vmatprep.subr.bf16.mxu0 0
    %239 = vmatpush1.bf16.msra.mxu0 %v217
    %240 = vmatprep.subr.bf16.mxu0 0
    %241 = vmatpush1.bf16.msra.mxu0 %v216
    %242 = vmatprep.subr.bf16.mxu0 0
    %243 = vmatpush1.bf16.msra.mxu0 %v215
    %244 = vmatprep.subr.bf16.mxu0 0
    %245 = vmatpush1.bf16.msra.mxu0 %v214
    %246 = vmatprep.subr.bf16.mxu0 0
    %247 = vmatpush2.bf16.msra.mxu0 0
    %248 = vmatprep.subr.bf16.mxu0 0
    %249 = vmatpush2.bf16.msra.mxu0 0
    %250 = vmatprep.subr.bf16.mxu0 0
    %251 = vmatpush2.bf16.msra.mxu0 0
    %252 = vmatprep.subr.bf16.mxu0 0
    %253 = vmatpush2.bf16.msra.mxu0 0
    %254 = vmatprep.subr.bf16.mxu0 0
    %255 = vmatpush2.bf16.msra.mxu0 0
    %256 = vmatprep.subr.bf16.mxu0 0
    %257 = vmatpush2.bf16.msra.mxu0 0
    %258 = vmatprep.subr.bf16.mxu0 0
    %259 = vmatpush2.bf16.msra.mxu0 0
    %260 = vmatprep.subr.bf16.mxu0 0
    %261 = vmatpush2.bf16.msra.mxu0 0
    %262 = vmatprep.mubr.bf16.mxu0 0
    %263 = vmatmul.mubr.bf16.gmra.mxu0 %v156
    %v264 = vpop.f32.mrf.mxu0
    %v265 = vadd.f32 %v180, %v264
    %v266 = vpop.f32.mrf.mxu0
    %v267 = vpop.f32.mrf.mxu0
    %v268 = vpop.f32.mrf.mxu0
    %269 = vdwg.mxu0
    %v270 = vmax.f32 %v265, 0.0
    %v271 = vpack.c.bf16 %v270, %v270
    %s272 = scalar_lea.vmem [#allocation5], 128
    %v273 = vld [vmem:[%s272] sm:$0xf]
    %v274 = vld [vmem:[%s272 + $0x4] sm:$0xf]
    %v275 = vld [vmem:[%s272 + $0x8] sm:$0xf]
    %v276 = vld [vmem:[%s272 + $0xc] sm:$0xf]
    %v277 = vld [vmem:[%s272 + $0x10] sm:$0xf]
    %v278 = vld [vmem:[%s272 + $0x14] sm:$0xf]
    %v279 = vld [vmem:[%s272 + $0x18] sm:$0xf]
    %v280 = vld [vmem:[%s272 + $0x1c] sm:$0xf]
    %v281 = vld [vmem:[%s272 + $0x20] sm:$0xf]
    %v282 = vld [vmem:[%s272 + $0x24] sm:$0xf]
    %v283 = vld [vmem:[%s272 + $0x28] sm:$0xf]
    %v284 = vld [vmem:[%s272 + $0x2c] sm:$0xf]
    %v285 = vld [vmem:[%s272 + $0x30] sm:$0xf]
    %v286 = vld [vmem:[%s272 + $0x34] sm:$0xf]
    %v287 = vld [vmem:[%s272 + $0x38] sm:$0xf]
    %v288 = vld [vmem:[%s272 + $0x3c] sm:$0xf]
    %s289 = scalar_lea.vmem %s2, 2
    %v290 = vld [vmem:[%s289] sm:$0x1]
    %v292 = vlaneseq
    %v293 = vshrl.u32 %v292, 7
    %v294 = vsub.s32 0, %v293
    %v295 = vrot.slane %v290, %v294
    %v313 = vunpack.c.l.b16 %v273
    %v314 = vunpack.c.l.b16 %v274
    %v315 = vunpack.c.l.b16 %v275
    %v316 = vunpack.c.l.b16 %v276
    %v317 = vunpack.c.l.b16 %v277
    %v318 = vunpack.c.l.b16 %v278
    %v319 = vunpack.c.l.b16 %v279
    %v320 = vunpack.c.l.b16 %v280
    %v321 = vunpack.c.l.b16 %v281
    %v322 = vunpack.c.l.b16 %v282
    %v323 = vunpack.c.l.b16 %v283
    %v324 = vunpack.c.l.b16 %v284
    %v325 = vunpack.c.l.b16 %v285
    %v326 = vunpack.c.l.b16 %v286
    %v327 = vunpack.c.l.b16 %v287
    %v328 = vunpack.c.l.b16 %v288
    %v329 = vpack.c.b16 %v314, %v313
    %v330 = vpack.c.b16 %v316, %v315
    %v331 = vpack.c.b16 %v318, %v317
    %v332 = vpack.c.b16 %v320, %v319
    %v333 = vpack.c.b16 %v322, %v321
    %v334 = vpack.c.b16 %v324, %v323
    %v335 = vpack.c.b16 %v326, %v325
    %v336 = vpack.c.b16 %v328, %v327
    %345 = vmatprep.subr.bf16.mxu0 0
    %346 = vmatpush1.bf16.msra.mxu0 %v336
    %347 = vmatprep.subr.bf16.mxu0 0
    %348 = vmatpush1.bf16.msra.mxu0 %v335
    %349 = vmatprep.subr.bf16.mxu0 0
    %350 = vmatpush1.bf16.msra.mxu0 %v334
    %351 = vmatprep.subr.bf16.mxu0 0
    %352 = vmatpush1.bf16.msra.mxu0 %v333
    %353 = vmatprep.subr.bf16.mxu0 0
    %354 = vmatpush1.bf16.msra.mxu0 %v332
    %355 = vmatprep.subr.bf16.mxu0 0
    %356 = vmatpush1.bf16.msra.mxu0 %v331
    %357 = vmatprep.subr.bf16.mxu0 0
    %358 = vmatpush1.bf16.msra.mxu0 %v330
    %359 = vmatprep.subr.bf16.mxu0 0
    %360 = vmatpush1.bf16.msra.mxu0 %v329
    %361 = vmatprep.subr.bf16.mxu0 0
    %362 = vmatpush2.bf16.msra.mxu0 0
    %363 = vmatprep.subr.bf16.mxu0 0
    %364 = vmatpush2.bf16.msra.mxu0 0
    %365 = vmatprep.subr.bf16.mxu0 0
    %366 = vmatpush2.bf16.msra.mxu0 0
    %367 = vmatprep.subr.bf16.mxu0 0
    %368 = vmatpush2.bf16.msra.mxu0 0
    %369 = vmatprep.subr.bf16.mxu0 0
    %370 = vmatpush2.bf16.msra.mxu0 0
    %371 = vmatprep.subr.bf16.mxu0 0
    %372 = vmatpush2.bf16.msra.mxu0 0
    %373 = vmatprep.subr.bf16.mxu0 0
    %374 = vmatpush2.bf16.msra.mxu0 0
    %375 = vmatprep.subr.bf16.mxu0 0
    %376 = vmatpush2.bf16.msra.mxu0 0
    %377 = vmatprep.mubr.bf16.mxu0 0
    %378 = vmatmul.mubr.bf16.gmra.mxu0 %v271
    %v379 = vpop.f32.mrf.mxu0
    %v380 = vadd.f32 %v295, %v379
    %v381 = vpop.f32.mrf.mxu0
    %v382 = vpop.f32.mrf.mxu0
    %v383 = vpop.f32.mrf.mxu0
    %384 = vdwg.mxu0
    %385 = vst [vmem:[#allocation7] sm:$0xff] %v380
    // Predicated region
    $region22: #{tpu_custom_call.1} parent=1 // pred_check
      _
    $region23: #{tpu_custom_call.1} parent=1 // pred_check_branch
      %387 = sbr.rel (0) target = $region25
    $region24: #{tpu_custom_call.1} parent=1 // pred_region
      %s389 = ssub.s32 128, 128
      %390 = vsyncadd [#allocation4], %s389
      %s392 = sshll.u32 [#allocation7], 4
      %s393 = int_to_ptr.vmem [resolvable:$true] %s392
      %395 = dma.vmem_to_hbm [thread:$0]  %s393, 128, %s3, [#allocation4]
    $region25: #{tpu_custom_call.1} parent=1 // pred_fallthru
      _
    // Predicated region
    $region26: #{tpu_custom_call.1} parent=1 // pred_check
      _
    $region27: #{tpu_custom_call.1} parent=1 // pred_check_branch
      %397 = sbr.rel (0) target = $region29
    $region28: #{tpu_custom_call.1} parent=1 // pred_region
      %398 = dma.done [#allocation4], 128
    $region29: #{tpu_custom_call.1} parent=1 // pred_fallthru
      _
    %399 = vsyncpa [#allocation3], 1
    %400 = vsyncpa [#allocation6], 1
    %401 = vsyncpa [#allocation4], 1

</llo_original>
